<compile_context>
chip_gen: v7x
topology: tpu7x:2x2x1
jax: 0.10.0
libtpu: 0.0.40
codegen_flags: <defaults>
</compile_context>

<pallas_src>
import functools

import jax
import jax.numpy as jnp
from jax.experimental import pallas as pl
from jax.experimental.pallas import tpu as pltpu


# --------------------------------------------------------------------------
# Stage 1: rank projection  hUS = (h @ U) * S        (tiny: ~D/V of the flops)
# --------------------------------------------------------------------------
def _rank_proj_kernel(h_ref, u_ref, s_ref, hus_ref):
    # h_ref  : [tmp, D]   hidden row tile
    # u_ref  : [D,   R]   U (resident; constant index_map -> DMA'd once)
    # s_ref  : [1,   R]   singular values (resident)
    # hus_ref: [tmp, R]   output tile of the rank projection
    hu = jnp.dot(h_ref[...], u_ref[...], preferred_element_type=jnp.float32)
    hus_ref[...] = (hu * s_ref[...].astype(jnp.float32)).astype(hus_ref.dtype)


# --------------------------------------------------------------------------
# Stage 2: vocab GEMM  out = hUS @ Vh                 (the expensive part)
# --------------------------------------------------------------------------
def _logits_kernel(hus_ref, vh_ref, o_ref):
    # hus_ref: [tm, R]   rank-projected row tile (already in Vh.dtype)
    # vh_ref : [R,  tn]  vocab tile of Vh (DMA'd exactly once: vocab axis is
    #                    the OUTER grid axis, rows iterate inside it)
    # o_ref  : [tm, tn]  output logits tile
    o_ref[...] = jnp.dot(
        hus_ref[...], vh_ref[...], preferred_element_type=jnp.float32
    ).astype(o_ref.dtype)


def _device_config():
    """Per-generation (tm, tn, vmem_limit_bytes) for the vocab GEMM."""
    try:
        kind = jax.devices()[0].device_kind.lower()
    except Exception:  # pragma: no cover - e.g. AOT / odd backends
        kind = ""
    if "v6" in kind:
        # 128 MiB physical VMEM, highest compute:HBM ratio -> biggest tiles.
        return 1024, 2048, 100 * 1024 * 1024
    if "v5" in kind:
        # 128 MiB physical VMEM; lower flop peak so tm=512 is already enough.
        return 512, 2048, 100 * 1024 * 1024
    if "v7" in kind:
        # Only 64 MiB VMEM per TensorCore -> stay under ~56 MiB.
        return 512, 2048, 56 * 1024 * 1024
    # Unknown chip: conservative budget that fits a 64 MiB VMEM.
    return 512, 1024, 48 * 1024 * 1024


@functools.partial(jax.jit, static_argnames=("tm", "tn", "out_dtype"))
def svd_lm_head(hidden_state, U, S, Vh, *, tm=None, tn=None, out_dtype=None):
    """hidden_state: [B, T, D]; U: [D, R]; S: [R]; Vh: [R, V] -> [B, T, V]."""
    B, T, D = hidden_state.shape
    R, V = Vh.shape
    M = B * T
    h2d = hidden_state.reshape(M, D)
    s2d = S.reshape(1, R)
    out_dtype = hidden_state.dtype if out_dtype is None else out_dtype
    # hUS lives in Vh.dtype so the hot GEMM has no per-step VPU cast; the
    # projection itself accumulates in f32 on the MXU.
    hus_dtype = Vh.dtype

    cfg_tm, cfg_tn, vmem_limit = _device_config()
    tm = cfg_tm if tm is None else tm
    tn = cfg_tn if tn is None else tn

    # Clamp tiles to the actual extents (full-dim blocks are always legal;
    # otherwise tm stays a multiple of 8 and tn a multiple of 128).
    tm = min(tm, M)
    tn = min(tn, V)
    # Projection row tile: the projection is cheap, so keep its VMEM modest
    # (U is double-buffered by default; a smaller row tile keeps the total
    # under the v7x / fallback budgets even for large D, R).
    tmp = min(tm, 256)

    n_rows_p = pl.cdiv(M, tmp)
    n_rows = pl.cdiv(M, tm)
    n_vocab = pl.cdiv(V, tn)

    # ---------------- Stage 1: hUS = (h @ U) * S ----------------
    proj_cost = pl.CostEstimate(
        flops=2 * M * D * R + M * R,
        transcendentals=0,
        bytes_accessed=(
            M * D * h2d.dtype.itemsize
            + D * R * U.dtype.itemsize
            + R * S.dtype.itemsize
            + M * R * jnp.dtype(hus_dtype).itemsize
        ),
    )
    hus = pl.pallas_call(
        _rank_proj_kernel,
        out_shape=jax.ShapeDtypeStruct((M, R), hus_dtype),
        grid_spec=pltpu.PrefetchScalarGridSpec(
            num_scalar_prefetch=0,
            grid=(n_rows_p,),
            in_specs=[
                pl.BlockSpec((tmp, D), lambda i: (i, 0)),  # hidden row tile
                pl.BlockSpec((D, R), lambda i: (0, 0)),    # U (resident)
                pl.BlockSpec((1, R), lambda i: (0, 0)),    # S (resident)
            ],
            out_specs=pl.BlockSpec((tmp, R), lambda i: (i, 0)),
        ),
        compiler_params=pltpu.CompilerParams(
            dimension_semantics=("parallel",),
            vmem_limit_bytes=vmem_limit,
        ),
        cost_estimate=proj_cost,
    )(h2d, U, s2d)

    # ---------------- Stage 2: out = hUS @ Vh ----------------
    # Vocab axis is the OUTER grid axis, so each Vh tile is DMA'd exactly
    # once and reused across every row tile; hUS (the small [M, R] operand)
    # is the one that gets re-streamed (n_vocab full passes, cheap).
    gemm_cost = pl.CostEstimate(
        flops=2 * M * R * V,
        transcendentals=0,
        bytes_accessed=(
            R * V * Vh.dtype.itemsize                        # Vh read once
            + n_vocab * M * R * jnp.dtype(hus_dtype).itemsize  # hUS re-reads
            + M * V * jnp.dtype(out_dtype).itemsize          # output write
        ),
    )
    out2d = pl.pallas_call(
        _logits_kernel,
        out_shape=jax.ShapeDtypeStruct((M, V), out_dtype),
        grid_spec=pltpu.PrefetchScalarGridSpec(
            num_scalar_prefetch=0,
            grid=(n_vocab, n_rows),
            in_specs=[
                pl.BlockSpec((tm, R), lambda j, i: (i, 0)),  # hUS row tile
                pl.BlockSpec((R, tn), lambda j, i: (0, j)),  # Vh vocab tile
            ],
            out_specs=pl.BlockSpec((tm, tn), lambda j, i: (i, j)),
        ),
        compiler_params=pltpu.CompilerParams(
            # j "parallel": vocab tiles shard across v7x's 2 TensorCores
            #   (each core still reads its share of Vh exactly once).
            # i "arbitrary": rows iterate contiguously under each vocab tile.
            dimension_semantics=("parallel", "arbitrary"),
            vmem_limit_bytes=vmem_limit,
        ),
        cost_estimate=gemm_cost,
    )(hus, Vh)

    return out2d.reshape(B, T, V)


def _reference(hidden_state, U, S, Vh):
    return (hidden_state @ U) * S @ Vh


if __name__ == "__main__":
    # Small, deterministic shapes consistent with an SVD-factored LM head:
    # hidden D=32, rank R=128, vocab V=256, batch B=2, seq T=8.
    B, T, D, R, V = 2, 8, 32, 128, 256

    key = jax.random.PRNGKey(0)
    k_h, k_u, k_s, k_v = jax.random.split(key, 4)

    hidden_state = jax.random.normal(k_h, (B, T, D), dtype=jnp.float32)
    U = jax.random.normal(k_u, (D, R), dtype=jnp.float32) * 0.05
    S = jax.random.uniform(k_s, (R,), dtype=jnp.float32, minval=0.5, maxval=2.0)
    Vh = jax.random.normal(k_v, (R, V), dtype=jnp.float32) * 0.05

    out = svd_lm_head(hidden_state, U, S, Vh)
    out = jax.block_until_ready(out)

    ref = _reference(hidden_state, U, S, Vh)
    assert out.shape == (B, T, V), out.shape
    assert jnp.allclose(out, ref, atol=1e-4, rtol=1e-4), (
        float(jnp.max(jnp.abs(out - ref)))
    )

    print("KERNEL_OK")
</pallas_src>

<mosaic_0001>
module attributes {stable_mosaic.version = 11 : i64} {
  func.func @_logits_kernel(%arg0: i32, %arg1: i32, %arg2: memref<16x128xf32, #tpu.memory_space<vmem>>, %arg3: memref<128x256xf32, #tpu.memory_space<vmem>>, %arg4: memref<16x256xf32, #tpu.memory_space<vmem>>) attributes {dimension_semantics = [#tpu.dimension_semantics<parallel>, #tpu.dimension_semantics<arbitrary>], iteration_bounds = array<i64: 1, 1>, scalar_prefetch = 0 : i64, scratch_operands = 0 : i64, tpu.core_type = #tpu.core_type<tc>, window_params = [{transform_indices = @transform_0, window_bounds = array<i64: 16, 128>}, {transform_indices = @transform_1, window_bounds = array<i64: 128, 256>}, {transform_indices = @transform_2, window_bounds = array<i64: 16, 256>}]} {
    %c0 = arith.constant 0 : index
    %c0_0 = arith.constant 0 : index
    %0 = vector.load %arg2[%c0, %c0_0] : memref<16x128xf32, #tpu.memory_space<vmem>>, vector<16x128xf32>
    %c0_1 = arith.constant 0 : index
    %c0_2 = arith.constant 0 : index
    %1 = vector.load %arg3[%c0_1, %c0_2] : memref<128x256xf32, #tpu.memory_space<vmem>>, vector<128x256xf32>
    %cst = arith.constant dense<0.000000e+00> : vector<16x256xf32>
    %2 = tpu.matmul %0, %1, %cst {dimension_numbers = #tpu.dot_dimension_numbers<[1], [0], [0], [1], [0, 0, 1, 1], [], []>} : vector<16x128xf32>, vector<128x256xf32>, vector<16x256xf32> -> vector<16x256xf32>
    %c0_3 = arith.constant 0 : index
    %c0_4 = arith.constant 0 : index
    %3 = vector.load %arg4[%c0_3, %c0_4] : memref<16x256xf32, #tpu.memory_space<vmem>>, vector<16x256xf32>
    tpu.vector_store %arg4[%c0_3, %c0_4], %2 {strides = array<i32>} : memref<16x256xf32, #tpu.memory_space<vmem>>, vector<16x256xf32>,
    return
  }
  func.func @transform_0(%arg0: i32, %arg1: i32) -> (i32, i32) {
    %c0_i32 = arith.constant 0 : i32
    %c0_i32_0 = arith.constant 0 : i32
    return %arg1, %c0_i32 : i32, i32
  }
  func.func @transform_1(%arg0: i32, %arg1: i32) -> (i32, i32) {
    %c0_i32 = arith.constant 0 : i32
    %c0_i32_0 = arith.constant 0 : i32
    return %c0_i32, %arg0 : i32, i32
  }
  func.func @transform_2(%arg0: i32, %arg1: i32) -> (i32, i32) {
    %c0_i32 = arith.constant 0 : i32
    return %arg1, %arg0 : i32, i32
  }
}

module attributes {stable_mosaic.version = 11 : i64} {
  func.func @_rank_proj_kernel(%arg0: i32, %arg1: memref<16x32xf32, #tpu.memory_space<vmem>>, %arg2: memref<32x128xf32, #tpu.memory_space<vmem>>, %arg3: memref<1x128xf32, #tpu.memory_space<vmem>>, %arg4: memref<16x128xf32, #tpu.memory_space<vmem>>) attributes {dimension_semantics = [#tpu.dimension_semantics<parallel>], iteration_bounds = array<i64: 1>, scalar_prefetch = 0 : i64, scratch_operands = 0 : i64, tpu.core_type = #tpu.core_type<tc>, window_params = [{transform_indices = @transform_0, window_bounds = array<i64: 16, 32>}, {pipeline_mode = #tpu.pipeline_mode<synchronous>, transform_indices = @transform_1, window_bounds = array<i64: 32, 128>}, {pipeline_mode = #tpu.pipeline_mode<synchronous>, transform_indices = @transform_2, window_bounds = array<i64: 1, 128>}, {transform_indices = @transform_3, window_bounds = array<i64: 16, 128>}]} {
    %c0 = arith.constant 0 : index
    %c0_0 = arith.constant 0 : index
    %0 = vector.load %arg1[%c0, %c0_0] : memref<16x32xf32, #tpu.memory_space<vmem>>, vector<16x32xf32>
    %c0_1 = arith.constant 0 : index
    %c0_2 = arith.constant 0 : index
    %1 = vector.load %arg2[%c0_1, %c0_2] : memref<32x128xf32, #tpu.memory_space<vmem>>, vector<32x128xf32>
    %cst = arith.constant dense<0.000000e+00> : vector<16x128xf32>
    %2 = tpu.matmul %0, %1, %cst {dimension_numbers = #tpu.dot_dimension_numbers<[1], [0], [0], [1], [0, 0, 1, 1], [], []>} : vector<16x32xf32>, vector<32x128xf32>, vector<16x128xf32> -> vector<16x128xf32>
    %c0_3 = arith.constant 0 : index
    %c0_4 = arith.constant 0 : index
    %3 = vector.load %arg3[%c0_3, %c0_4] : memref<1x128xf32, #tpu.memory_space<vmem>>, vector<1x128xf32>
    %4 = vector.broadcast %3 : vector<1x128xf32> to vector<16x128xf32>
    %5 = arith.mulf %2, %4 : vector<16x128xf32>
    %c0_5 = arith.constant 0 : index
    %c0_6 = arith.constant 0 : index
    %6 = vector.load %arg4[%c0_5, %c0_6] : memref<16x128xf32, #tpu.memory_space<vmem>>, vector<16x128xf32>
    tpu.vector_store %arg4[%c0_5, %c0_6], %5 {strides = array<i32>} : memref<16x128xf32, #tpu.memory_space<vmem>>, vector<16x128xf32>,
    return
  }
  func.func @transform_0(%arg0: i32) -> (i32, i32) {
    %c0_i32 = arith.constant 0 : i32
    %c0_i32_0 = arith.constant 0 : i32
    return %arg0, %c0_i32 : i32, i32
  }
  func.func @transform_1(%arg0: i32) -> (i32, i32) {
    %c0_i32 = arith.constant 0 : i32
    %c0_i32_0 = arith.constant 0 : i32
    %c0_i32_1 = arith.constant 0 : i32
    return %c0_i32, %c0_i32_0 : i32, i32
  }
  func.func @transform_2(%arg0: i32) -> (i32, i32) {
    %c0_i32 = arith.constant 0 : i32
    %c0_i32_0 = arith.constant 0 : i32
    %c0_i32_1 = arith.constant 0 : i32
    return %c0_i32, %c0_i32_0 : i32, i32
  }
  func.func @transform_3(%arg0: i32) -> (i32, i32) {
    %c0_i32 = arith.constant 0 : i32
    %c0_i32_0 = arith.constant 0 : i32
    return %arg0, %c0_i32 : i32, i32
  }
}

</mosaic_0001>

<llo_original>
// kernel: svd_lm_head.3
$region0: #{svd_lm_head.3}
  #allocation0 [shape = 'u32[]', space=smem, size = 0x4, offset = 0x4, fixed_abs, tag = 'smem constant byte address 0x4 - core index']
  #allocation1 [shape = 'u32[144,128]{1,0:T(1,128)}', space=vmem, size = 0x12000, scoped, tag = 'internal scratch']
  %s0 = inlined_call_operand.vmem [shape: f32[16,128], index: 0, kind: input, shape index: {}]
  %s1 = inlined_call_operand.hbm [shape: f32[128,256], index: 1, kind: input, shape index: {}]
  %s2 = inlined_call_operand.hbm [shape: f32[16,256], index: 2, kind: output, shape index: {}]
  %s3 = sld [smem:[#allocation0]]
  $region22: #{svd_lm_head.3} parent=0
    _
  %s5 = ssub.s32 1, %s3
  %s6 = scalar_select 0, %s5, %s3
  $region1: #{svd_lm_head.3} parent=0
    #allocation2 [shape = 'u8[131072]{0}', space=vmem, size = 0x20000, scoped, tag = 'input window, operand 1, single buffered']
    #allocation3 [shape = 's32[1]{0}', space=sflag, size = 0x4, scoped, tag = 'scoped memory for svd_lm_head.3']
    #allocation4 [shape = 's32[1]{0}', space=sflag, size = 0x4, scoped, tag = 'scoped memory for svd_lm_head.3']
    #allocation5 [shape = 'u8[16384]{0}', space=vmem, size = 0x4000, scoped, tag = 'output window, operand 0, single buffered']
    %7 = vsyncpa [#allocation3], 0
    %8 = vsyncpa [#allocation4], 0
    // Predicated region
    $region2: #{svd_lm_head.3} parent=1 // pred_check
      _
    $region3: #{svd_lm_head.3} parent=1 // pred_check_branch
      %10 = sbr.rel (0) target = $region5
    $region4: #{svd_lm_head.3} parent=1 // pred_region
      _
    $region5: #{svd_lm_head.3} parent=1 // pred_fallthru
      _
    // Predicated region
    $region6: #{svd_lm_head.3} parent=1 // pred_check
      _
    $region7: #{svd_lm_head.3} parent=1 // pred_check_branch
      %12 = sbr.rel (0) target = $region9
    $region8: #{svd_lm_head.3} parent=1 // pred_region
      %s14 = ssub.s32 4096, 4096
      %15 = vsyncadd [#allocation3], %s14
      %s16 = sshll.u32 [#allocation2], 4
      %s17 = int_to_ptr.vmem [resolvable:$true] %s16
      %22 = dma.hbm_to_vmem [thread:$0]  %s1, 4096, %s17, [#allocation3], 256, 256, 16
    $region9: #{svd_lm_head.3} parent=1 // pred_fallthru
      _
    // Predicated region
    $region10: #{svd_lm_head.3} parent=1 // pred_check
      _
    $region11: #{svd_lm_head.3} parent=1 // pred_check_branch
      %24 = sbr.rel (0) target = $region13
    $region12: #{svd_lm_head.3} parent=1 // pred_region
      %25 = dma.done [#allocation3], 4096
    $region13: #{svd_lm_head.3} parent=1 // pred_fallthru
      _
    %v26 = vld [vmem:[%s0] sm:$0xff]
    %v27 = vld [vmem:[%s0 + $0x8] sm:$0xff]
    %v28 = vld [vmem:[#allocation2] sm:$0xff]
    %v29 = vld [vmem:[#allocation2 + $0x8] sm:$0xff]
    %v30 = vld [vmem:[#allocation2 + $0x10] sm:$0xff]
    %v31 = vld [vmem:[#allocation2 + $0x18] sm:$0xff]
    %v32 = vld [vmem:[#allocation2 + $0x20] sm:$0xff]
    %v33 = vld [vmem:[#allocation2 + $0x28] sm:$0xff]
    %v34 = vld [vmem:[#allocation2 + $0x30] sm:$0xff]
    %v35 = vld [vmem:[#allocation2 + $0x38] sm:$0xff]
    %v36 = vld [vmem:[#allocation2 + $0x40] sm:$0xff]
    %v37 = vld [vmem:[#allocation2 + $0x48] sm:$0xff]
    %v38 = vld [vmem:[#allocation2 + $0x50] sm:$0xff]
    %v39 = vld [vmem:[#allocation2 + $0x58] sm:$0xff]
    %v40 = vld [vmem:[#allocation2 + $0x60] sm:$0xff]
    %v41 = vld [vmem:[#allocation2 + $0x68] sm:$0xff]
    %v42 = vld [vmem:[#allocation2 + $0x70] sm:$0xff]
    %v43 = vld [vmem:[#allocation2 + $0x78] sm:$0xff]
    %v44 = vld [vmem:[#allocation2 + $0x80] sm:$0xff]
    %v45 = vld [vmem:[#allocation2 + $0x88] sm:$0xff]
    %v46 = vld [vmem:[#allocation2 + $0x90] sm:$0xff]
    %v47 = vld [vmem:[#allocation2 + $0x98] sm:$0xff]
    %v48 = vld [vmem:[#allocation2 + $0xa0] sm:$0xff]
    %v49 = vld [vmem:[#allocation2 + $0xa8] sm:$0xff]
    %v50 = vld [vmem:[#allocation2 + $0xb0] sm:$0xff]
    %v51 = vld [vmem:[#allocation2 + $0xb8] sm:$0xff]
    %v52 = vld [vmem:[#allocation2 + $0xc0] sm:$0xff]
    %v53 = vld [vmem:[#allocation2 + $0xc8] sm:$0xff]
    %v54 = vld [vmem:[#allocation2 + $0xd0] sm:$0xff]
    %v55 = vld [vmem:[#allocation2 + $0xd8] sm:$0xff]
    %v56 = vld [vmem:[#allocation2 + $0xe0] sm:$0xff]
    %v57 = vld [vmem:[#allocation2 + $0xe8] sm:$0xff]
    %v58 = vld [vmem:[#allocation2 + $0xf0] sm:$0xff]
    %v59 = vld [vmem:[#allocation2 + $0xf8] sm:$0xff]
    %60 = vmatprep.subr.mxu0 %v29
    %61 = vmatpush1.msra.mxu0 %v28
    %62 = vmatprep.subr.mxu0 %v31
    %63 = vmatpush1.msra.mxu0 %v30
    %64 = vmatprep.subr.mxu0 %v33
    %65 = vmatpush1.msra.mxu0 %v32
    %66 = vmatprep.subr.mxu0 %v35
    %67 = vmatpush1.msra.mxu0 %v34
    %68 = vmatprep.subr.mxu0 %v37
    %69 = vmatpush1.msra.mxu0 %v36
    %70 = vmatprep.subr.mxu0 %v39
    %71 = vmatpush1.msra.mxu0 %v38
    %72 = vmatprep.subr.mxu0 %v41
    %73 = vmatpush1.msra.mxu0 %v40
    %74 = vmatprep.subr.mxu0 %v43
    %75 = vmatpush1.msra.mxu0 %v42
    %76 = vmatprep.subr.mxu0 %v45
    %77 = vmatpush1.msra.mxu0 %v44
    %78 = vmatprep.subr.mxu0 %v47
    %79 = vmatpush1.msra.mxu0 %v46
    %80 = vmatprep.subr.mxu0 %v49
    %81 = vmatpush1.msra.mxu0 %v48
    %82 = vmatprep.subr.mxu0 %v51
    %83 = vmatpush1.msra.mxu0 %v50
    %84 = vmatprep.subr.mxu0 %v53
    %85 = vmatpush1.msra.mxu0 %v52
    %86 = vmatprep.subr.mxu0 %v55
    %87 = vmatpush1.msra.mxu0 %v54
    %88 = vmatprep.subr.mxu0 %v57
    %89 = vmatpush1.msra.mxu0 %v56
    %90 = vmatprep.subr.mxu0 %v59
    %91 = vmatpush1.msra.mxu0 %v58
    %92 = vmatprep.subr.mxu0 0.0
    %93 = vmatpush1.msra.mxu0 0.0
    %94 = vmatprep.subr.mxu0 0.0
    %95 = vmatpush1.msra.mxu0 0.0
    %96 = vmatprep.subr.mxu0 0.0
    %97 = vmatpush1.msra.mxu0 0.0
    %98 = vmatprep.subr.mxu0 0.0
    %99 = vmatpush1.msra.mxu0 0.0
    %100 = vmatprep.subr.mxu0 0.0
    %101 = vmatpush1.msra.mxu0 0.0
    %102 = vmatprep.subr.mxu0 0.0
    %103 = vmatpush1.msra.mxu0 0.0
    %104 = vmatprep.subr.mxu0 0.0
    %105 = vmatpush1.msra.mxu0 0.0
    %106 = vmatprep.subr.mxu0 0.0
    %107 = vmatpush1.msra.mxu0 0.0
    %108 = vmatprep.subr.mxu0 0.0
    %109 = vmatpush1.msra.mxu0 0.0
    %110 = vmatprep.subr.mxu0 0.0
    %111 = vmatpush1.msra.mxu0 0.0
    %112 = vmatprep.subr.mxu0 0.0
    %113 = vmatpush1.msra.mxu0 0.0
    %114 = vmatprep.subr.mxu0 0.0
    %115 = vmatpush1.msra.mxu0 0.0
    %116 = vmatprep.subr.mxu0 0.0
    %117 = vmatpush1.msra.mxu0 0.0
    %118 = vmatprep.subr.mxu0 0.0
    %119 = vmatpush1.msra.mxu0 0.0
    %120 = vmatprep.subr.mxu0 0.0
    %121 = vmatpush1.msra.mxu0 0.0
    %122 = vmatprep.subr.mxu0 0.0
    %123 = vmatpush1.msra.mxu0 0.0
    %124 = vmatprep.mubr.f32.mxu0 0.0
    %125 = vmatmul.mubr.f32.gmra.mrb[0].mxu0 %v26
    %v126 = vpop.f32.mrb[0].mxu0
    %v127 = vadd.f32 0.0, %v126
    %v128 = vpop.f32.mrb[0].mxu0
    %v129 = vadd.f32 0.0, %v128
    %130 = vmatprep.mubr.f32.mxu0 0.0
    %131 = vmatmul.mubr.f32.gmra.mrb[0].mxu0 %v27
    %v132 = vpop.f32.mrb[0].mxu0
    %v133 = vadd.f32 0.0, %v132
    %v134 = vpop.f32.mrb[0].mxu0
    %v135 = vadd.f32 0.0, %v134
    %136 = vdwg.mxu0
    %137 = vst [vmem:[#allocation5] sm:$0xff] %v127
    %138 = vst [vmem:[#allocation5 + $0x8] sm:$0xff] %v129
    %139 = vst [vmem:[#allocation5 + $0x10] sm:$0xff] %v133
    %140 = vst [vmem:[#allocation5 + $0x18] sm:$0xff] %v135
    // Predicated region
    $region14: #{svd_lm_head.3} parent=1 // pred_check
      _
    $region15: #{svd_lm_head.3} parent=1 // pred_check_branch
      %142 = sbr.rel (0) target = $region17
    $region16: #{svd_lm_head.3} parent=1 // pred_region
      %s144 = ssub.s32 512, 512
      %145 = vsyncadd [#allocation4], %s144
      %s146 = sshll.u32 [#allocation5], 4
      %s147 = int_to_ptr.vmem [resolvable:$true] %s146
      %152 = dma.vmem_to_hbm [thread:$0]  %s147, 512, %s2, [#allocation4], 256, 256, 16
    $region17: #{svd_lm_head.3} parent=1 // pred_fallthru
      _
    // Predicated region
    $region18: #{svd_lm_head.3} parent=1 // pred_check
      _
    $region19: #{svd_lm_head.3} parent=1 // pred_check_branch
      %154 = sbr.rel (0) target = $region21
    $region20: #{svd_lm_head.3} parent=1 // pred_region
      %155 = dma.done [#allocation4], 512
    $region21: #{svd_lm_head.3} parent=1 // pred_fallthru
      _
    %156 = vsyncpa [#allocation3], 1
    %157 = vsyncpa [#allocation4], 1

// kernel: svd_lm_head.2
$region0: #{svd_lm_head.2}
  #allocation0 [shape = 'u32[]', space=smem, size = 0x4, offset = 0x4, fixed_abs, tag = 'smem constant byte address 0x4 - core index']
  #allocation1 [shape = 'u32[144,128]{1,0:T(1,128)}', space=vmem, size = 0x12000, scoped, tag = 'internal scratch']
  %s0 = inlined_call_operand.hbm [shape: f32[16,32], index: 0, kind: input, shape index: {}]
  %s1 = inlined_call_operand.hbm [shape: f32[32,128], index: 1, kind: input, shape index: {}]
  %s2 = inlined_call_operand.vmem [shape: f32[1,128], index: 2, kind: input, shape index: {}]
  %s3 = inlined_call_operand.vmem [shape: f32[16,128], index: 3, kind: output, shape index: {}]
  %s4 = sld [smem:[#allocation0]]
  $region30: #{svd_lm_head.2} parent=0
    _
  %s6 = ssub.s32 1, %s4
  %s7 = scalar_select 0, %s6, %s4
  $region1: #{svd_lm_head.2} parent=0
    #allocation2 [shape = 'u8[8192]{0}', space=vmem, size = 0x2000, scoped, tag = 'input window, operand 0, single buffered']
    #allocation3 [shape = 's32[1]{0}', space=sflag, size = 0x4, scoped, tag = 'scoped memory for svd_lm_head.2']
    #allocation4 [shape = 'u8[16384]{0}', space=vmem, size = 0x4000, scoped, tag = 'input window, operand 1, single buffered']
    #allocation5 [shape = 's32[1]{0}', space=sflag, size = 0x4, scoped, tag = 'scoped memory for svd_lm_head.2']
    %8 = vsyncpa [#allocation3], 0
    %9 = vsyncpa [#allocation5], 0
    // Predicated region
    $region2: #{svd_lm_head.2} parent=1 // pred_check
      _
    $region3: #{svd_lm_head.2} parent=1 // pred_check_branch
      %11 = sbr.rel (0) target = $region5
    $region4: #{svd_lm_head.2} parent=1 // pred_region
      %s13 = ssub.s32 256, 256
      %14 = vsyncadd [#allocation3], %s13
      %s15 = sshll.u32 [#allocation2], 4
      %s16 = int_to_ptr.vmem [resolvable:$true] %s15
      %21 = dma.hbm_to_vmem [thread:$0]  %s0, 256, %s16, [#allocation3], 128, 128, 8
    $region5: #{svd_lm_head.2} parent=1 // pred_fallthru
      _
    // Predicated region
    $region6: #{svd_lm_head.2} parent=1 // pred_check
      _
    $region7: #{svd_lm_head.2} parent=1 // pred_check_branch
      %23 = sbr.rel (0) target = $region9
    $region8: #{svd_lm_head.2} parent=1 // pred_region
      %s25 = ssub.s32 512, 512
      %26 = vsyncadd [#allocation5], %s25
      %s27 = sshll.u32 [#allocation4], 4
      %s28 = int_to_ptr.vmem [resolvable:$true] %s27
      %33 = dma.hbm_to_vmem [thread:$0]  %s1, 512, %s28, [#allocation5], 128, 128, 8
    $region9: #{svd_lm_head.2} parent=1 // pred_fallthru
      _
    // Predicated region
    $region10: #{svd_lm_head.2} parent=1 // pred_check
      _
    $region11: #{svd_lm_head.2} parent=1 // pred_check_branch
      %35 = sbr.rel (0) target = $region13
    $region12: #{svd_lm_head.2} parent=1 // pred_region
      _
    $region13: #{svd_lm_head.2} parent=1 // pred_fallthru
      _
    // Predicated region
    $region14: #{svd_lm_head.2} parent=1 // pred_check
      _
    $region15: #{svd_lm_head.2} parent=1 // pred_check_branch
      %37 = sbr.rel (0) target = $region17
    $region16: #{svd_lm_head.2} parent=1 // pred_region
      %38 = dma.done [#allocation3], 256
    $region17: #{svd_lm_head.2} parent=1 // pred_fallthru
      _
    // Predicated region
    $region18: #{svd_lm_head.2} parent=1 // pred_check
      _
    $region19: #{svd_lm_head.2} parent=1 // pred_check_branch
      %40 = sbr.rel (0) target = $region21
    $region20: #{svd_lm_head.2} parent=1 // pred_region
      %41 = dma.done [#allocation5], 512
    $region21: #{svd_lm_head.2} parent=1 // pred_fallthru
      _
    %v42 = vld [vmem:[#allocation2] sm:$0xff]
    %v43 = vld [vmem:[#allocation2 + $0x8] sm:$0xff]
    %v44 = vld [vmem:[#allocation4] sm:$0xff]
    %v45 = vld [vmem:[#allocation4 + $0x8] sm:$0xff]
    %v46 = vld [vmem:[#allocation4 + $0x10] sm:$0xff]
    %v47 = vld [vmem:[#allocation4 + $0x18] sm:$0xff]
    %vm48 = vcmask 261120
    %v50 = vsel %vm48, %v42, 0
    %v53 = vsel %vm48, %v43, 0
    %55 = vmatprep.subr.mxu0 0.0
    %56 = vmatpush1.msra.mxu0 %v44
    %57 = vmatprep.subr.mxu0 0.0
    %58 = vmatpush1.msra.mxu0 %v45
    %59 = vmatprep.subr.mxu0 0.0
    %60 = vmatpush1.msra.mxu0 %v46
    %61 = vmatprep.subr.mxu0 0.0
    %62 = vmatpush1.msra.mxu0 %v47
    %63 = vmatprep.subr.mxu0 0.0
    %64 = vmatpush1.msra.mxu0 0.0
    %65 = vmatprep.subr.mxu0 0.0
    %66 = vmatpush1.msra.mxu0 0.0
    %67 = vmatprep.subr.mxu0 0.0
    %68 = vmatpush1.msra.mxu0 0.0
    %69 = vmatprep.subr.mxu0 0.0
    %70 = vmatpush1.msra.mxu0 0.0
    %71 = vmatprep.subr.mxu0 0.0
    %72 = vmatpush1.msra.mxu0 0.0
    %73 = vmatprep.subr.mxu0 0.0
    %74 = vmatpush1.msra.mxu0 0.0
    %75 = vmatprep.subr.mxu0 0.0
    %76 = vmatpush1.msra.mxu0 0.0
    %77 = vmatprep.subr.mxu0 0.0
    %78 = vmatpush1.msra.mxu0 0.0
    %79 = vmatprep.subr.mxu0 0.0
    %80 = vmatpush1.msra.mxu0 0.0
    %81 = vmatprep.subr.mxu0 0.0
    %82 = vmatpush1.msra.mxu0 0.0
    %83 = vmatprep.subr.mxu0 0.0
    %84 = vmatpush1.msra.mxu0 0.0
    %85 = vmatprep.subr.mxu0 0.0
    %86 = vmatpush1.msra.mxu0 0.0
    %87 = vmatprep.subr.mxu0 0.0
    %88 = vmatpush1.msra.mxu0 0.0
    %89 = vmatprep.subr.mxu0 0.0
    %90 = vmatpush1.msra.mxu0 0.0
    %91 = vmatprep.subr.mxu0 0.0
    %92 = vmatpush1.msra.mxu0 0.0
    %93 = vmatprep.subr.mxu0 0.0
    %94 = vmatpush1.msra.mxu0 0.0
    %95 = vmatprep.subr.mxu0 0.0
    %96 = vmatpush1.msra.mxu0 0.0
    %97 = vmatprep.subr.mxu0 0.0
    %98 = vmatpush1.msra.mxu0 0.0
    %99 = vmatprep.subr.mxu0 0.0
    %100 = vmatpush1.msra.mxu0 0.0
    %101 = vmatprep.subr.mxu0 0.0
    %102 = vmatpush1.msra.mxu0 0.0
    %103 = vmatprep.subr.mxu0 0.0
    %104 = vmatpush1.msra.mxu0 0.0
    %105 = vmatprep.subr.mxu0 0.0
    %106 = vmatpush1.msra.mxu0 0.0
    %107 = vmatprep.subr.mxu0 0.0
    %108 = vmatpush1.msra.mxu0 0.0
    %109 = vmatprep.subr.mxu0 0.0
    %110 = vmatpush1.msra.mxu0 0.0
    %111 = vmatprep.subr.mxu0 0.0
    %112 = vmatpush1.msra.mxu0 0.0
    %113 = vmatprep.subr.mxu0 0.0
    %114 = vmatpush1.msra.mxu0 0.0
    %115 = vmatprep.subr.mxu0 0.0
    %116 = vmatpush1.msra.mxu0 0.0
    %117 = vmatprep.subr.mxu0 0.0
    %118 = vmatpush1.msra.mxu0 0.0
    %119 = vmatprep.mubr.f32.mxu0 0.0
    %120 = vmatmul.mubr.f32.gmra.mrb[0].mxu0 %v50
    %v121 = vpop.f32.mrb[0].mxu0
    %v122 = vadd.f32 0.0, %v121
    %v123 = vpop.f32.mrb[0].mxu0
    %124 = vmatprep.mubr.f32.mxu0 0.0
    %125 = vmatmul.mubr.f32.gmra.mrb[0].mxu0 %v53
    %v126 = vpop.f32.mrb[0].mxu0
    %v127 = vadd.f32 0.0, %v126
    %v128 = vpop.f32.mrb[0].mxu0
    %129 = vdwg.mxu0
    %v130 = vld [vmem:[%s2] sm:$0x1]
    %v132 = vlaneseq
    %v133 = vshrl.u32 %v132, 7
    %v134 = vsub.s32 0, %v133
    %v135 = vrot.slane %v130, %v134
    %v137 = vmul.f32 %v122, %v135
    %v138 = vmul.f32 %v127, %v135
    %139 = vst [vmem:[%s3] sm:$0xff] %v137
    %140 = vst [vmem:[%s3 + $0x8] sm:$0xff] %v138
    // Predicated region
    $region22: #{svd_lm_head.2} parent=1 // pred_check
      _
    $region23: #{svd_lm_head.2} parent=1 // pred_check_branch
      %142 = sbr.rel (0) target = $region25
    $region24: #{svd_lm_head.2} parent=1 // pred_region
      _
    $region25: #{svd_lm_head.2} parent=1 // pred_fallthru
      _
    // Predicated region
    $region26: #{svd_lm_head.2} parent=1 // pred_check
      _
    $region27: #{svd_lm_head.2} parent=1 // pred_check_branch
      %144 = sbr.rel (0) target = $region29
    $region28: #{svd_lm_head.2} parent=1 // pred_region
      _
    $region29: #{svd_lm_head.2} parent=1 // pred_fallthru
      _
    %145 = vsyncpa [#allocation3], 1
    %146 = vsyncpa [#allocation5], 1

</llo_original>
